<compile_context>
chip_gen: v6e
topology: v6e:2x2x1
jax: 0.10.0
libtpu: 0.0.40
codegen_flags: <defaults>
</compile_context>

<pallas_src>
import functools

import jax
import jax.numpy as jnp
from jax.experimental import pallas as pl
from jax.experimental.pallas import tpu as pltpu

LANES = 128


def _smape_kernel(yp_ref, yt_ref, out_ref, acc_ref, *,
                  steps, tile_rows, total_rows, acc_rows, scale, has_tail):
    """Per-split partial sum of 2*|yp-yt| / (|yt|+|yp|+2e-8), scaled by 200/n."""
    c = pl.program_id(0)            # parallel split (TensorCore) axis
    i = pl.program_id(1)            # reduction (arbitrary) axis

    @pl.when(i == 0)
    def _():
        acc_ref[...] = jnp.zeros_like(acc_ref)

    yp = yp_ref[...].astype(jnp.float32)
    yt = yt_ref[...].astype(jnp.float32)
    # The /2 of the denominator is folded into `scale` (200/n instead of 100/n).
    term = jnp.abs(yp - yt) / (jnp.abs(yt) + jnp.abs(yp) + 2e-8)

    def accumulate(t):
        # acc_rows/8 vregs -> independent VALU add chains; pure elementwise adds.
        acc_ref[...] += t.reshape(-1, acc_rows, LANES).sum(axis=0)

    if has_tail:
        blk = c * steps + i                    # logical (unclamped) block index
        valid = total_rows - blk * tile_rows   # number of real rows in this tile

        @pl.when(valid >= tile_rows)           # bulk tiles: no masking cost
        def _():
            accumulate(term)

        @pl.when(valid < tile_rows)            # tail / redundant tiles only
        def _():
            row_ids = jax.lax.broadcasted_iota(jnp.int32, term.shape, 0)
            accumulate(jnp.where(row_ids < valid, term, 0.0))
    else:
        accumulate(term)

    @pl.when(i == pl.num_programs(1) - 1)
    def _():
        # One cross-lane/sublane reduce, once per split.
        total = jnp.sum(acc_ref[...]) * scale
        out_ref[...] = jnp.full((1, 1), total, dtype=out_ref.dtype)


def _tpu_generation():
    try:
        kind = jax.devices()[0].device_kind.lower()
    except Exception:
        return 0
    for g in (7, 6, 5, 4):
        if f"v{g}" in kind:
            return g
    return 0


def _row_align(dtype):
    # Sublane packing: f32 -> 8 rows, bf16/f16 -> 16, int8/fp8 -> 32.
    return {1: 32, 2: 16}.get(jnp.dtype(dtype).itemsize, 8)


def smape_loss(y_pred, y_true, *, tile_rows=None, num_splits=None):
    """SMAPE loss = mean(|yp - yt| / ((|yt|+|yp|)/2 + 1e-8)) * 100, as a scalar."""
    assert y_pred.shape == y_true.shape
    n = int(y_pred.size)
    assert n > 0

    gen = _tpu_generation()
    if tile_rows is None:
        # v7x: big tiles to amortize per-step overhead vs 3.2 TB/s HBM;
        # v6e/v5e: stay comfortably inside the scoped-VMEM defaults.
        tile_rows = {7: 8192, 6: 4096}.get(gen, 2048)
    if num_splits is None:
        num_splits = 2 if gen >= 7 else 1   # only v7x has 2 TensorCores / chip

    yp = y_pred.reshape(-1)                 # native dtype; cast happens in-kernel
    yt = y_true.reshape(-1)

    # Free 2-D view when n is lane-aligned (no HBM copy).  Otherwise pad only to
    # the next multiple of 128 (zero padding contributes exactly 0 to the sum).
    # TODO(synk): for lane-unaligned n, drive the kernel from the flat 1-D array
    # with in-kernel element-index masking to avoid even this pad copy.
    lane_pad = (-n) % LANES
    if lane_pad:
        yp = jnp.pad(yp, (0, lane_pad))
        yt = jnp.pad(yt, (0, lane_pad))
    rows = (n + lane_pad) // LANES
    yp = yp.reshape(rows, LANES)
    yt = yt.reshape(rows, LANES)

    row_align = max(_row_align(y_pred.dtype), _row_align(y_true.dtype))

    if rows < row_align:
        # Tiny input: a single block equal to the full array dims (always legal).
        num_splits = 1
        tr = rows
    else:
        per_split = pl.cdiv(rows, num_splits)
        tr = min(tile_rows, per_split)
        tr = max(row_align, (tr // row_align) * row_align)   # aligned, <= rows

    # Accumulator width: as many independent add chains as tr allows (<= 4 vregs).
    acc_rows = next((r for r in (32, 16, 8) if tr % r == 0), tr)

    steps = pl.cdiv(rows, num_splits * tr)
    last_block = pl.cdiv(rows, tr) - 1
    has_tail = (num_splits * steps * tr) != rows

    def in_index_map(c, i):
        # Clamp so every block starts in-bounds; redundant trailing blocks of the
        # last split are masked to a zero contribution inside the kernel.
        return (jnp.minimum(c * steps + i, last_block), 0)

    kernel = functools.partial(
        _smape_kernel,
        steps=steps, tile_rows=tr, total_rows=rows, acc_rows=acc_rows,
        scale=200.0 / float(n), has_tail=has_tail)

    itemsizes = (jnp.dtype(y_pred.dtype).itemsize + jnp.dtype(y_true.dtype).itemsize)
    tile_bytes = tr * LANES * itemsizes          # one tile of BOTH inputs
    # 2 pipeline buffers per input (+ scratch/output slack); never below the
    # 32 MiB scoped default, never above v7x's 64 MiB physical VMEM.
    vmem_limit = min(64 * 2**20, max(2 * tile_bytes + (4 << 20), 32 * 2**20))

    out = pl.pallas_call(
        kernel,
        out_shape=jax.ShapeDtypeStruct((num_splits, 1), jnp.float32),
        grid_spec=pltpu.PrefetchScalarGridSpec(
            num_scalar_prefetch=0,
            grid=(num_splits, steps),
            in_specs=[
                pl.BlockSpec((tr, LANES), in_index_map),
                pl.BlockSpec((tr, LANES), in_index_map),
            ],
            out_specs=pl.BlockSpec((1, 1), lambda c, i: (c, 0)),
            scratch_shapes=[pltpu.VMEM((acc_rows, LANES), jnp.float32)],
        ),
        compiler_params=pltpu.CompilerParams(
            dimension_semantics=("parallel", "arbitrary"),
            vmem_limit_bytes=vmem_limit,
        ),
        cost_estimate=pl.CostEstimate(
            flops=7 * n,
            transcendentals=0,
            bytes_accessed=n * itemsizes + 4 * num_splits,
        ),
    )(yp, yt)

    # Sum per-split partials (each already scaled by 200 / n).
    return jnp.sum(out)


def _reference(y_pred, y_true):
    denom = (jnp.abs(y_true) + jnp.abs(y_pred)) / 2
    return jnp.mean(jnp.abs(y_pred - y_true) / (denom + 1e-8)) * 100


if __name__ == "__main__":
    key = jax.random.PRNGKey(0)
    k1, k2, k3, k4 = jax.random.split(key, 4)

    # Small shape consistent with a generic prediction tensor (NCHW).
    shape = (2, 4, 16, 16)
    y_pred = jax.random.normal(k1, shape, dtype=jnp.float32)
    y_true = jax.random.normal(k2, shape, dtype=jnp.float32)

    loss = jax.block_until_ready(smape_loss(y_pred, y_true))
    ref = _reference(y_pred, y_true)
    assert jnp.allclose(loss, ref, rtol=1e-5, atol=1e-4), (loss, ref)

    # Second check: lane-unaligned size exercising the in-kernel tail masking.
    shape2 = (3, 5, 7, 11)
    yp2 = jax.random.normal(k3, shape2, dtype=jnp.float32)
    yt2 = jax.random.normal(k4, shape2, dtype=jnp.float32)
    loss2 = jax.block_until_ready(smape_loss(yp2, yt2))
    ref2 = _reference(yp2, yt2)
    assert jnp.allclose(loss2, ref2, rtol=1e-5, atol=1e-4), (loss2, ref2)

    print("KERNEL_OK")
</pallas_src>

<mosaic_0001>
module attributes {stable_mosaic.version = 11 : i64} {
  func.func @_smape_kernel(%arg0: i32, %arg1: i32, %arg2: memref<16x128xf32, #tpu.memory_space<vmem>>, %arg3: memref<16x128xf32, #tpu.memory_space<vmem>>, %arg4: memref<1x1xf32, #tpu.memory_space<vmem>>, %arg5: memref<16x128xf32, #tpu.memory_space<vmem>>) attributes {dimension_semantics = [#tpu.dimension_semantics<parallel>, #tpu.dimension_semantics<arbitrary>], iteration_bounds = array<i64: 1, 1>, scalar_prefetch = 0 : i64, scratch_operands = 1 : i64, tpu.core_type = #tpu.core_type<tc>, window_params = [{transform_indices = @transform_0, window_bounds = array<i64: 16, 128>}, {transform_indices = @transform_1, window_bounds = array<i64: 16, 128>}, {transform_indices = @transform_2, window_bounds = array<i64: 1, 1>}]} {
    %c0_i32 = arith.constant 0 : i32
    %0 = arith.cmpi eq, %arg1, %c0_i32 : i32
    %1 = arith.extui %0 : i1 to i32
    %c0_i32_0 = arith.constant 0 : i32
    %2 = arith.cmpi ne, %1, %c0_i32_0 : i32
    scf.if %2 {
      %cst_11 = arith.constant 0.000000e+00 : f32
      %21 = vector.broadcast %cst_11 : f32 to vector<16x128xf32>
      %c0_12 = arith.constant 0 : index
      %c0_13 = arith.constant 0 : index
      %22 = vector.load %arg5[%c0_12, %c0_13] : memref<16x128xf32, #tpu.memory_space<vmem>>, vector<16x128xf32>
      tpu.vector_store %arg5[%c0_12, %c0_13], %21 {strides = array<i32>} : memref<16x128xf32, #tpu.memory_space<vmem>>, vector<16x128xf32>,
    } else {
    }
    %c0 = arith.constant 0 : index
    %c0_1 = arith.constant 0 : index
    %3 = vector.load %arg2[%c0, %c0_1] : memref<16x128xf32, #tpu.memory_space<vmem>>, vector<16x128xf32>
    %c0_2 = arith.constant 0 : index
    %c0_3 = arith.constant 0 : index
    %4 = vector.load %arg3[%c0_2, %c0_3] : memref<16x128xf32, #tpu.memory_space<vmem>>, vector<16x128xf32>
    %5 = arith.subf %3, %4 : vector<16x128xf32>
    %6 = math.absf %5 : vector<16x128xf32>
    %7 = math.absf %4 : vector<16x128xf32>
    %8 = math.absf %3 : vector<16x128xf32>
    %9 = arith.addf %7, %8 : vector<16x128xf32>
    %cst = arith.constant 2.000000e-08 : f32
    %10 = vector.broadcast %cst : f32 to vector<16x128xf32>
    %11 = arith.addf %9, %10 : vector<16x128xf32>
    %12 = arith.divf %6, %11 : vector<16x128xf32>
    %c0_4 = arith.constant 0 : index
    %c0_5 = arith.constant 0 : index
    %13 = vector.load %arg5[%c0_4, %c0_5] : memref<16x128xf32, #tpu.memory_space<vmem>>, vector<16x128xf32>
    %14 = vector.shape_cast %12 : vector<16x128xf32> to vector<1x16x128xf32>
    %cst_6 = arith.constant dense<0.000000e+00> : vector<16x128xf32>
    %15 = vector.multi_reduction <add>, %14, %cst_6 [0] : vector<1x16x128xf32> to vector<16x128xf32>
    %16 = arith.addf %13, %15 : vector<16x128xf32>
    %c0_7 = arith.constant 0 : index
    %c0_8 = arith.constant 0 : index
    %17 = vector.load %arg5[%c0_7, %c0_8] : memref<16x128xf32, #tpu.memory_space<vmem>>, vector<16x128xf32>
    tpu.vector_store %arg5[%c0_7, %c0_8], %16 {strides = array<i32>} : memref<16x128xf32, #tpu.memory_space<vmem>>, vector<16x128xf32>,
    %c0_i32_9 = arith.constant 0 : i32
    %18 = arith.cmpi eq, %arg1, %c0_i32_9 : i32
    %19 = arith.extui %18 : i1 to i32
    %c0_i32_10 = arith.constant 0 : i32
    %20 = arith.cmpi ne, %19, %c0_i32_10 : i32
    scf.if %20 {
      %c0_11 = arith.constant 0 : index
      %c0_12 = arith.constant 0 : index
      %21 = vector.load %arg5[%c0_11, %c0_12] : memref<16x128xf32, #tpu.memory_space<vmem>>, vector<16x128xf32>
      %22 = vector.shape_cast %21 : vector<16x128xf32> to vector<1x16x128xf32>
      %cst_13 = arith.constant dense<0.000000e+00> : vector<1xf32>
      %23 = vector.multi_reduction <add>, %22, %cst_13 [1, 2] : vector<1x16x128xf32> to vector<1xf32>
      %24 = vector.shape_cast %23 : vector<1xf32> to vector<1x1x1xf32>
      %25 = vector.extract %24[0, 0, 0] : f32 from vector<1x1x1xf32>
      %cst_14 = arith.constant 0.09765625 : f32
      %26 = arith.mulf %25, %cst_14 : f32
      %27 = vector.broadcast %26 : f32 to vector<1x1xf32>
      %c0_15 = arith.constant 0 : index
      %c0_16 = arith.constant 0 : index
      %28 = vector.load %arg4[%c0_15, %c0_16] : memref<1x1xf32, #tpu.memory_space<vmem>>, vector<1x1xf32>
      tpu.vector_store %arg4[%c0_15, %c0_16], %27 {strides = array<i32>} : memref<1x1xf32, #tpu.memory_space<vmem>>, vector<1x1xf32>,
    } else {
    }
    return
  }
  func.func @transform_0(%arg0: i32, %arg1: i32) -> (i32, i32) {
    %c1_i32 = arith.constant 1 : i32
    %0 = arith.muli %arg0, %c1_i32 : i32
    %1 = arith.addi %0, %arg1 : i32
    %c0_i32 = arith.constant 0 : i32
    %2 = arith.minsi %1, %c0_i32 : i32
    %c0_i32_0 = arith.constant 0 : i32
    %c0_i32_1 = arith.constant 0 : i32
    return %2, %c0_i32_0 : i32, i32
  }
  func.func @transform_1(%arg0: i32, %arg1: i32) -> (i32, i32) {
    %c1_i32 = arith.constant 1 : i32
    %0 = arith.muli %arg0, %c1_i32 : i32
    %1 = arith.addi %0, %arg1 : i32
    %c0_i32 = arith.constant 0 : i32
    %2 = arith.minsi %1, %c0_i32 : i32
    %c0_i32_0 = arith.constant 0 : i32
    %c0_i32_1 = arith.constant 0 : i32
    return %2, %c0_i32_0 : i32, i32
  }
  func.func @transform_2(%arg0: i32, %arg1: i32) -> (i32, i32) {
    %c0_i32 = arith.constant 0 : i32
    %c0_i32_0 = arith.constant 0 : i32
    return %arg0, %c0_i32 : i32, i32
  }
}

</mosaic_0001>

<llo_original>
// kernel: tpu_custom_call.1
$region0: #{tpu_custom_call.1}
  #allocation0 [shape = 'u32[]', space=smem, size = 0x4, offset = 0x4, fixed_abs, tag = 'smem constant byte address 0x4 - core index']
  #allocation1 [shape = 'u32[144,128]{1,0:T(1,128)}', space=vmem, size = 0x12000, scoped, tag = 'internal scratch']
  #allocation2 [shape = 'f32[16,128]{1,0:T(8,128)}', space=vmem, size = 0x2000, scoped, tag = 'scratch operand']
  %s0 = inlined_call_operand.hbm [shape: f32[16,128], index: 0, kind: input, shape index: {}]
  %s1 = inlined_call_operand.hbm [shape: f32[16,128], index: 1, kind: input, shape index: {}]
  %s2 = inlined_call_operand.hbm [shape: f32[1,1], index: 2, kind: output, shape index: {}]
  %s3 = sld [smem:[#allocation0]]
  $region34: #{tpu_custom_call.1} parent=0
    _
  %s5 = ssub.s32 1, %s3
  %s6 = scalar_select 0, %s5, %s3
  $region1: #{tpu_custom_call.1} parent=0
    #allocation3 [shape = 'u8[8192]{0}', space=vmem, size = 0x2000, scoped, tag = 'input window, operand 0, single buffered']
    #allocation4 [shape = 's32[1]{0}', space=sflag, size = 0x4, scoped, tag = 'scoped memory for tpu_custom_call.1']
    #allocation5 [shape = 's32[1]{0}', space=sflag, size = 0x4, scoped, tag = 'scoped memory for tpu_custom_call.1']
    #allocation6 [shape = 'u8[8192]{0}', space=vmem, size = 0x2000, scoped, tag = 'input window, operand 1, single buffered']
    #allocation7 [shape = 's32[1]{0}', space=sflag, size = 0x4, scoped, tag = 'scoped memory for tpu_custom_call.1']
    #allocation8 [shape = 'u8[512]{0}', space=vmem, size = 0x400, scoped, tag = 'output window, operand 0, single buffered']
    %7 = vsyncpa [#allocation4], 0
    %8 = vsyncpa [#allocation7], 0
    %9 = vsyncpa [#allocation5], 0
    // Predicated region
    $region2: #{tpu_custom_call.1} parent=1 // pred_check
      _
    $region3: #{tpu_custom_call.1} parent=1 // pred_check_branch
      %11 = sbr.rel (0) target = $region5
    $region4: #{tpu_custom_call.1} parent=1 // pred_region
      %s12 = sadd.s32 0, 0
      %p13 = scmp.lt.s32.totalorder %s12, 0
      %s14 = scalar_select %p13, %s12, 0
      %s15 = smul.u32 2, %s14
      %s17 = ssub.s32 256, 256
      %18 = vsyncadd [#allocation4], %s17
      %s19 = smul.addr %s15, 128
      %s20 = scalar_lea.hbm %s0, %s19
      %s21 = sshll.u32 [#allocation3], 4
      %s22 = int_to_ptr.vmem [resolvable:$true] %s21
      %27 = dma.hbm_to_vmem [thread:$0]  %s20, 256, %s22, [#allocation4], 128, 128, 8
    $region5: #{tpu_custom_call.1} parent=1 // pred_fallthru
      _
    // Predicated region
    $region6: #{tpu_custom_call.1} parent=1 // pred_check
      _
    $region7: #{tpu_custom_call.1} parent=1 // pred_check_branch
      %29 = sbr.rel (0) target = $region9
    $region8: #{tpu_custom_call.1} parent=1 // pred_region
      %s30 = sadd.s32 0, 0
      %p31 = scmp.lt.s32.totalorder %s30, 0
      %s32 = scalar_select %p31, %s30, 0
      %s33 = smul.u32 2, %s32
      %s35 = ssub.s32 256, 256
      %36 = vsyncadd [#allocation7], %s35
      %s37 = smul.addr %s33, 128
      %s38 = scalar_lea.hbm %s1, %s37
      %s39 = sshll.u32 [#allocation6], 4
      %s40 = int_to_ptr.vmem [resolvable:$true] %s39
      %45 = dma.hbm_to_vmem [thread:$0]  %s38, 256, %s40, [#allocation7], 128, 128, 8
    $region9: #{tpu_custom_call.1} parent=1 // pred_fallthru
      _
    // Predicated region
    $region10: #{tpu_custom_call.1} parent=1 // pred_check
      _
    $region11: #{tpu_custom_call.1} parent=1 // pred_check_branch
      %47 = sbr.rel (0) target = $region13
    $region12: #{tpu_custom_call.1} parent=1 // pred_region
      %48 = dma.done [#allocation4], 256
    $region13: #{tpu_custom_call.1} parent=1 // pred_fallthru
      _
    // Predicated region
    $region14: #{tpu_custom_call.1} parent=1 // pred_check
      _
    $region15: #{tpu_custom_call.1} parent=1 // pred_check_branch
      %50 = sbr.rel (0) target = $region17
    $region16: #{tpu_custom_call.1} parent=1 // pred_region
      %51 = dma.done [#allocation7], 256
    $region17: #{tpu_custom_call.1} parent=1 // pred_fallthru
      _
    %s52 = sadd.s32 0, 0
    %p53 = scmp.lt.s32.totalorder %s52, 0
    %s54 = scalar_select %p53, %s52, 0
    %s55 = smul.u32 2, %s54
    %s56 = sadd.s32 0, 0
    %p57 = scmp.lt.s32.totalorder %s56, 0
    %s58 = scalar_select %p57, %s56, 0
    %s59 = smul.u32 2, %s58
    %p60 = scmp.eq.s32.totalorder 0, 0
    // Predicated region
    $region18: #{tpu_custom_call.1} parent=1 // pred_check
      %p61 = pneg %p60
    $region19: #{tpu_custom_call.1} parent=1 // pred_check_branch
      %63 = sbr.rel (%p61) target = $region21
    $region20: #{tpu_custom_call.1} parent=1 // pred_region
      %64 = vst [vmem:[#allocation2] sm:$0xff] 0.0
      %65 = vst [vmem:[#allocation2 + $0x8] sm:$0xff] 0.0
    $region21: #{tpu_custom_call.1} parent=1 // pred_fallthru
      _
    %v66 = vld [vmem:[#allocation3] sm:$0xff]
    %v67 = vld [vmem:[#allocation3 + $0x8] sm:$0xff]
    %v68 = vld [vmem:[#allocation6] sm:$0xff]
    %v69 = vld [vmem:[#allocation6 + $0x8] sm:$0xff]
    %v70 = vsub.f32 %v66, %v68
    %v71 = vsub.f32 %v67, %v69
    %v72 = vand.u32 2147483647, %v70
    %v73 = vand.u32 2147483647, %v71
    %v74 = vand.u32 2147483647, %v68
    %v75 = vand.u32 2147483647, %v69
    %v76 = vand.u32 2147483647, %v66
    %v77 = vand.u32 2147483647, %v67
    %v78 = vadd.f32 %v74, %v76
    %v79 = vadd.f32 %v75, %v77
    %v80 = vadd.f32 %v78, 2e-08
    %v81 = vadd.f32 %v79, 2e-08
    %v82 = vrcp.pop %v80
    %v83 = vmul.f32 %v72, %v82
    %v84 = vrcp.pop %v81
    %v85 = vmul.f32 %v73, %v84
    %v86 = vld [vmem:[#allocation2] sm:$0xff]
    %v87 = vld [vmem:[#allocation2 + $0x8] sm:$0xff]
    %v88 = vadd.f32 %v83, 0.0
    %v89 = vadd.f32 %v85, 0.0
    %v90 = vadd.f32 %v86, %v88
    %v91 = vadd.f32 %v87, %v89
    %92 = vst [vmem:[#allocation2] sm:$0xff] %v90
    %93 = vst [vmem:[#allocation2 + $0x8] sm:$0xff] %v91
    // Predicated region
    $region22: #{tpu_custom_call.1} parent=1 // pred_check
      %p94 = pneg %p60
    $region23: #{tpu_custom_call.1} parent=1 // pred_check_branch
      %96 = sbr.rel (%p94) target = $region25
    $region24: #{tpu_custom_call.1} parent=1 // pred_region
      %v97 = vld [vmem:[#allocation2] sm:$0xff]
      %v98 = vld [vmem:[#allocation2 + $0x8] sm:$0xff]
      %v99 = vadd.f32 %v97, %v98
      %100 = vadd.xlane.f32.xlu0 %v99
      %v101 = vpop.xlane.xlu0 %100
      %v102 = vrot.slane %v101, 4
      %v103 = vadd.f32 %v101, %v102
      %v104 = vrot.slane %v103, 2
      %v105 = vadd.f32 %v103, %v104
      %v106 = vrot.slane %v105, 1
      %v107 = vadd.f32 %v105, %v106
      %s108 = vtos %v107
      %s109 = smul.f32 %s108, 0.09765625
      %v110 = vstv %s109
      %vm111 = vcmask 0
      %112 = vst.msk [vmem:[#allocation8] sm:$0x1] %vm111, %v110
    $region25: #{tpu_custom_call.1} parent=1 // pred_fallthru
      _
    // Predicated region
    $region26: #{tpu_custom_call.1} parent=1 // pred_check
      _
    $region27: #{tpu_custom_call.1} parent=1 // pred_check_branch
      %114 = sbr.rel (0) target = $region29
    $region28: #{tpu_custom_call.1} parent=1 // pred_region
      %s116 = ssub.s32 16, 16
      %117 = vsyncadd [#allocation5], %s116
      %s119 = sshll.u32 [#allocation8], 4
      %s120 = int_to_ptr.vmem [resolvable:$true] %s119
      %122 = dma.vmem_to_hbm [thread:$0]  %s120, 16, %s2, [#allocation5]
    $region29: #{tpu_custom_call.1} parent=1 // pred_fallthru
      _
    // Predicated region
    $region30: #{tpu_custom_call.1} parent=1 // pred_check
      _
    $region31: #{tpu_custom_call.1} parent=1 // pred_check_branch
      %124 = sbr.rel (0) target = $region33
    $region32: #{tpu_custom_call.1} parent=1 // pred_region
      %125 = dma.done [#allocation5], 16
    $region33: #{tpu_custom_call.1} parent=1 // pred_fallthru
      _
    %126 = vsyncpa [#allocation4], 1
    %127 = vsyncpa [#allocation7], 1
    %128 = vsyncpa [#allocation5], 1

</llo_original>
